<compile_context>
chip_gen: v7x
topology: tpu7x:2x2x1
jax: 0.10.0
libtpu: 0.0.40
codegen_flags: <defaults>
</compile_context>

<pallas_src>
import numpy as np
import jax
import jax.numpy as jnp
from jax.experimental import pallas as pl
from jax.experimental.pallas import tpu as pltpu


def _round_up(x, m):
    return ((x + m - 1) // m) * m


def make_torch_stft(filter_length=800, hop_length=200, win_length=800):
    n_fft = int(filter_length)
    hop = int(hop_length)
    assert win_length <= n_fft
    assert n_fft % hop == 0, "n_fft must be an integer multiple of hop_length"
    r = n_fft // hop                      # overlap factor (4 at module defaults 800/200)
    K = n_fft // 2 + 1                    # onesided rfft bins
    n_fft_pad = _round_up(n_fft, 128)     # lane-dense padded time axis (800 -> 896)

    # ---- periodic ('fftbins') Hann window, centered / zero-padded to n_fft ----
    nw = np.arange(win_length)
    win = 0.5 - 0.5 * np.cos(2.0 * np.pi * nw / win_length)
    window_np = np.zeros(n_fft, np.float64)
    lpad = (n_fft - win_length) // 2
    window_np[lpad:lpad + win_length] = win

    # ---- forward onesided DFT with the analysis window folded in ----
    kk = np.arange(K)[None, :]
    nn = np.arange(n_fft)[:, None]
    ang = 2.0 * np.pi * nn * kk / n_fft                       # (n_fft, K)
    wf_re = window_np[:, None] * np.cos(ang)                  # (n_fft, K)
    wf_im = -(window_np[:, None] * np.sin(ang))               # (n_fft, K)

    # ---- inverse onesided DFT (irfft) with the synthesis window folded in ----
    ck = np.full(K, 2.0); ck[0] = 1.0
    sk = np.full(K, 2.0); sk[0] = 0.0
    if n_fft % 2 == 0:                                        # Nyquist bin: imag dropped
        ck[-1] = 1.0; sk[-1] = 0.0
    ang_i = 2.0 * np.pi * np.arange(K)[:, None] * np.arange(n_fft)[None, :] / n_fft
    wi_re = (ck[:, None] / n_fft) * np.cos(ang_i) * window_np[None, :]    # (K, n_fft)
    wi_im = (-sk[:, None] / n_fft) * np.sin(ang_i) * window_np[None, :]   # (K, n_fft)

    # ---- fused matrix: windowed DFT -> (abs/angle -> mag*exp(i*phase) == identity) -> windowed
    # iDFT, precomputed in float64 and lane-padded to (n_fft_pad, n_fft_pad) ----
    comb = wf_re @ wi_re + wf_im @ wi_im                      # (n_fft, n_fft), float64
    comb_pad = np.zeros((n_fft_pad, n_fft_pad), np.float64)
    comb_pad[:n_fft, :n_fft] = comb
    comb_j = jnp.asarray(comb_pad, jnp.float32)

    # ---- precomputed OLA window-envelope pieces (depend only on static config) ----
    wsq_np = window_np ** 2

    # ---- physical VMEM (for the vmem_limit cap); queried once outside any trace ----
    try:
        _phys_vmem = int(pltpu.get_tpu_info().vmem_capacity_bytes)
    except Exception:
        _phys_vmem = 64 * 1024 * 1024     # v7x per-TC VMEM: safe lower bound across generations

    # ------------------------------------------------------------------
    # Fused kernel: single MXU matmul against the precomputed DFT->iDFT matrix
    # ------------------------------------------------------------------
    def stft_istft_kernel(frames_ref, c_ref, out_ref):
        # frames: (TILE_BF, n_fft_pad), c: (n_fft_pad, n_fft_pad) -- VMEM-resident constant
        out_ref[...] = jnp.dot(frames_ref[...], c_ref[...],
                               preferred_element_type=jnp.float32)

    def forward(x):
        assert x.ndim == 2, "input_data is (B, T)"
        B, T = x.shape
        pad = n_fft // 2
        assert T > pad, "signal too short for reflect padding (T must exceed n_fft//2)"

        # ---- torch.stft(center=True, pad_mode='reflect') framing (XLA glue) ----
        xp = jnp.pad(x, ((0, 0), (pad, pad)), mode="reflect")
        Lp = T + 2 * pad
        F = 1 + (Lp - n_fft) // hop
        # TODO(synk): framing is an XLA gather that materializes an r-times-redundant HBM array;
        # for long signals it could be built in-kernel from contiguous xp spans via
        # memory_space=pl.ANY DMAs.  Kept as XLA glue for lowering robustness (matmul is MXU-bound).
        idx = np.arange(F)[:, None] * hop + np.arange(n_fft)[None, :]
        frames = xp[:, idx].reshape(B * F, n_fft).astype(jnp.float32)

        BF = B * F
        # >= 2 grid steps (both v7x TensorCores busy), up to 512-row tiles for long signals.
        TILE_BF = min(512, _round_up(pl.cdiv(BF, 2), 8))
        BF_pad = _round_up(BF, TILE_BF)
        frames = jnp.pad(frames, ((0, BF_pad - BF), (0, n_fft_pad - n_fft)))

        # VMEM budget: constant (x2 buffers) + in/out tiles (x2 buffers each) + slack,
        # capped below physical VMEM so it also fits v7x's 64 MiB.
        const_bytes = n_fft_pad * n_fft_pad * 4
        tile_bytes = TILE_BF * n_fft_pad * 4
        need = 2 * const_bytes + 4 * tile_bytes + (4 << 20)
        vmem_limit = int(min(max(need, 32 << 20), int(0.9 * _phys_vmem)))

        frames_t = pl.pallas_call(
            stft_istft_kernel,
            out_shape=jax.ShapeDtypeStruct((BF_pad, n_fft_pad), jnp.float32),
            grid=(BF_pad // TILE_BF,),
            in_specs=[
                pl.BlockSpec((TILE_BF, n_fft_pad), lambda i: (i, 0)),
                pl.BlockSpec((n_fft_pad, n_fft_pad), lambda i: (0, 0)),  # VMEM-resident constant
            ],
            out_specs=pl.BlockSpec((TILE_BF, n_fft_pad), lambda i: (i, 0)),
            compiler_params=pltpu.CompilerParams(
                dimension_semantics=("parallel",),     # shards frame tiles across v7x's 2 TCs
                vmem_limit_bytes=vmem_limit),
        )(frames, comb_j)
        frames_t = frames_t[:BF, :n_fft].reshape(B, F, n_fft)

        # ---- overlap-add + clamped reciprocal window envelope + center trim (XLA glue,
        #      < 0.1% of FLOPs per the perf review; avoids sublane-misaligned RMW stores) ----
        total_len = n_fft + hop * (F - 1)
        n_rows = F + r - 1
        env = np.zeros(total_len, np.float64)
        for f in range(F):
            env[f * hop: f * hop + n_fft] += wsq_np
        # NOTE: torch.istft raises when the NOLA condition fails; here such samples are zeroed.
        inv_env = jnp.asarray(np.where(env > 1e-11, 1.0 / env, 0.0), jnp.float32)

        frames4 = frames_t.reshape(B, F, r, hop)
        y_rows = jnp.zeros((B, n_rows, hop), jnp.float32)
        for j in range(r):                                   # r static shifted adds (r = 4)
            y_rows = y_rows.at[:, j:j + F, :].add(frames4[:, :, j, :])
        y = y_rows.reshape(B, total_len) * inv_env[None, :]

        # ---- torch.istft center trim, then .unsqueeze(-2) ----
        y = y[:, pad: total_len - pad]                       # (B, hop*(F-1))
        return y[:, None, :]                                 # (B, 1, L_out)

    return forward


if __name__ == "__main__":
    key = jax.random.PRNGKey(0)
    B, T = 2, 256
    x = jax.random.normal(key, (B, T), dtype=jnp.float32)

    # small, COLA-satisfying STFT config consistent with the module (defaults 800/200/800)
    stft = make_torch_stft(filter_length=64, hop_length=16, win_length=64)
    out = jax.jit(stft)(x)
    out = jax.block_until_ready(out)

    assert out.shape == (B, 1, T), out.shape
    assert out.dtype == jnp.float32
    # stft -> abs/angle -> istft round trip must reconstruct the signal
    err = float(jnp.max(jnp.abs(out[:, 0, :] - x)))
    assert err < 5e-3, f"reconstruction error too large: {err}"
    print("KERNEL_OK")
</pallas_src>

<mosaic_0001>
module attributes {stable_mosaic.version = 11 : i64} {
  func.func @stft_istft_kernel(%arg0: i32, %arg1: memref<24x128xf32, #tpu.memory_space<vmem>>, %arg2: memref<128x128xf32, #tpu.memory_space<vmem>>, %arg3: memref<24x128xf32, #tpu.memory_space<vmem>>) attributes {dimension_semantics = [#tpu.dimension_semantics<parallel>], iteration_bounds = array<i64: 2>, scalar_prefetch = 0 : i64, scratch_operands = 0 : i64, tpu.core_type = #tpu.core_type<tc>, window_params = [{transform_indices = @transform_0, window_bounds = array<i64: 24, 128>}, {pipeline_mode = #tpu.pipeline_mode<synchronous>, transform_indices = @transform_1, window_bounds = array<i64: 128, 128>}, {transform_indices = @transform_2, window_bounds = array<i64: 24, 128>}]} {
    %c0 = arith.constant 0 : index
    %c0_0 = arith.constant 0 : index
    %0 = vector.load %arg1[%c0, %c0_0] : memref<24x128xf32, #tpu.memory_space<vmem>>, vector<24x128xf32>
    %c0_1 = arith.constant 0 : index
    %c0_2 = arith.constant 0 : index
    %1 = vector.load %arg2[%c0_1, %c0_2] : memref<128x128xf32, #tpu.memory_space<vmem>>, vector<128x128xf32>
    %cst = arith.constant dense<0.000000e+00> : vector<24x128xf32>
    %2 = tpu.matmul %0, %1, %cst {dimension_numbers = #tpu.dot_dimension_numbers<[1], [0], [0], [1], [0, 0, 1, 1], [], []>} : vector<24x128xf32>, vector<128x128xf32>, vector<24x128xf32> -> vector<24x128xf32>
    %c0_3 = arith.constant 0 : index
    %c0_4 = arith.constant 0 : index
    %3 = vector.load %arg3[%c0_3, %c0_4] : memref<24x128xf32, #tpu.memory_space<vmem>>, vector<24x128xf32>
    tpu.vector_store %arg3[%c0_3, %c0_4], %2 {strides = array<i32>} : memref<24x128xf32, #tpu.memory_space<vmem>>, vector<24x128xf32>,
    return
  }
  func.func @transform_0(%arg0: i32) -> (i32, i32) {
    %c0_i32 = arith.constant 0 : i32
    %c0_i32_0 = arith.constant 0 : i32
    return %arg0, %c0_i32 : i32, i32
  }
  func.func @transform_1(%arg0: i32) -> (i32, i32) {
    %c0_i32 = arith.constant 0 : i32
    %c0_i32_0 = arith.constant 0 : i32
    %c0_i32_1 = arith.constant 0 : i32
    return %c0_i32, %c0_i32_0 : i32, i32
  }
  func.func @transform_2(%arg0: i32) -> (i32, i32) {
    %c0_i32 = arith.constant 0 : i32
    %c0_i32_0 = arith.constant 0 : i32
    return %arg0, %c0_i32 : i32, i32
  }
}

</mosaic_0001>

<llo_original>
// kernel: forward.1
$region0: #{forward.1}
  #allocation0 [shape = 'u32[]', space=smem, size = 0x4, offset = 0x4, fixed_abs, tag = 'smem constant byte address 0x4 - core index']
  #allocation1 [shape = 'u32[144,128]{1,0:T(1,128)}', space=vmem, size = 0x12000, scoped, tag = 'internal scratch']
  %s0 = inlined_call_operand.vmem [shape: f32[48,128], index: 0, kind: input, shape index: {}]
  %s1 = inlined_call_operand.vmem [shape: f32[128,128], index: 1, kind: input, shape index: {}]
  %s2 = inlined_call_operand.vmem [shape: f32[48,128], index: 2, kind: output, shape index: {}]
  %s3 = sld [smem:[#allocation0]]
  $region41: #{forward.1} parent=0
    _
  %s5 = ssub.s32 1, %s3
  %s6 = scalar_select 0, %s5, %s3
  loop: start=0, step=1, limit=4
  $region2: #{forward.1} parent=0 // loop_pre_header
    _
  $region3: #{forward.1} parent=0 // loop_header
    %s8 = sphi 0, %s12
    %p9 = scmp.ge.s32.totalorder %s8, 4
    %s18 = sphi 0, %s20
    %s21 = sphi 0, %s18
    %s22 = sphi 0, %s21
    %s38 = sphi 0, %s22
    %s42 = sphi 0, %s42
    %s44 = sphi 0, %s42
    %s45 = sphi 0, %s44
    %s59 = sphi 0, %s45
    %s65 = sphi 0, %s67
    %s68 = sphi 0, %s65
    %s69 = sphi 0, %s68
    %s85 = sphi 0, %s69
  $region4: #{forward.1} parent=0 // loop_header_branch
    %11 = sbr.rel (%p9) target = $region8
  $region5: #{forward.1} parent=0 // loop_body
    %s13 = ssub.s32 %s8, 1
    %s14 = ssub.s32 %s8, 2
    %s15 = sadd.s32 %s8, 1
    %s16 = ssub.s32 %s8, %s15
    %p17 = scmp.eq.s32.totalorder %s16, 0
    %s19 = sadd.s32 %s18, 1
    %s20 = scalar_select %p17, %s18, %s19
    %p23 = pneg %p17
    %p24 = scmp.eq.s32.totalorder %s8, 1
    %p25 = por %p23, %p24
    %p26 = scmp.ne.s32.totalorder %s18, %s21
    %p27 = scmp.eq.s32.totalorder %s8, 0
    %p28 = por %p26, %p27
    %p29 = scmp.ne.s32.totalorder %s18, %s21
    %p30 = scmp.eq.s32.totalorder %s13, 1
    %p31 = por %p29, %p30
    %p32 = scmp.ne.s32.totalorder %s21, %s22
    %p33 = scmp.eq.s32.totalorder %s13, 0
    %p34 = por %p32, %p33
    %p35 = scmp.ne.s32.totalorder %s21, %s22
    %p36 = scmp.eq.s32.totalorder %s14, 1
    %p37 = por %p35, %p36
    %p39 = scmp.ne.s32.totalorder %s22, %s38
    %p40 = scmp.eq.s32.totalorder %s14, 0
    %p41 = por %p39, %p40
    %s43 = sadd.s32 %s42, 1
    %p46 = scmp.eq.s32.totalorder %s8, 1
    %p47 = scmp.ne.s32.totalorder %s42, %s44
    %p48 = scmp.eq.s32.totalorder %s8, 0
    %p49 = por %p47, %p48
    %p50 = scmp.ne.s32.totalorder %s42, %s44
    %p51 = scmp.eq.s32.totalorder %s13, 1
    %p52 = por %p50, %p51
    %p53 = scmp.ne.s32.totalorder %s44, %s45
    %p54 = scmp.eq.s32.totalorder %s13, 0
    %p55 = por %p53, %p54
    %p56 = scmp.ne.s32.totalorder %s44, %s45
    %p57 = scmp.eq.s32.totalorder %s14, 1
    %p58 = por %p56, %p57
    %p60 = scmp.ne.s32.totalorder %s45, %s59
    %p61 = scmp.eq.s32.totalorder %s14, 0
    %p62 = por %p60, %p61
    %s63 = ssub.s32 %s8, %s15
    %p64 = scmp.eq.s32.totalorder %s63, 0
    %s66 = sadd.s32 %s65, 1
    %s67 = scalar_select %p64, %s65, %s66
    %p70 = pneg %p64
    %p71 = scmp.eq.s32.totalorder %s8, 1
    %p72 = por %p70, %p71
    %p73 = scmp.ne.s32.totalorder %s65, %s68
    %p74 = scmp.eq.s32.totalorder %s8, 0
    %p75 = por %p73, %p74
    %p76 = scmp.ne.s32.totalorder %s65, %s68
    %p77 = scmp.eq.s32.totalorder %s13, 1
    %p78 = por %p76, %p77
    %p79 = scmp.ne.s32.totalorder %s68, %s69
    %p80 = scmp.eq.s32.totalorder %s13, 0
    %p81 = por %p79, %p80
    %p82 = scmp.ne.s32.totalorder %s68, %s69
    %p83 = scmp.eq.s32.totalorder %s14, 1
    %p84 = por %p82, %p83
    %p86 = scmp.ne.s32.totalorder %s69, %s85
    %p87 = scmp.eq.s32.totalorder %s14, 0
    %p88 = por %p86, %p87
    %p89 = scmp.le.s32.totalorder 1, %s8
    %p90 = scmp.lt.s32.totalorder %s8, 3
    %p91 = pnand %p89, %p90
    %p92 = pneg %p91
    // Predicated region
    $region9: #{forward.1} parent=5 // pred_check
      _
    $region10: #{forward.1} parent=5 // pred_check_branch
      %94 = sbr.rel (%p91) target = $region12
    $region11: #{forward.1} parent=5 // pred_region
      %s95 = ssub.s32 %s8, 1
      // Predicated region
      $region13: #{forward.1} parent=11 // pred_check
        %p96 = pneg %p55
      $region14: #{forward.1} parent=11 // pred_check_branch
        %98 = sbr.rel (%p96) target = $region16
      $region15: #{forward.1} parent=11 // pred_region
        _
      $region16: #{forward.1} parent=11 // pred_fallthru
        _
    $region12: #{forward.1} parent=5 // pred_fallthru
      _
    %p99 = scmp.lt.s32.totalorder %s8, 2
    // Predicated region
    $region17: #{forward.1} parent=5 // pred_check
      %p100 = pneg %p99
    $region18: #{forward.1} parent=5 // pred_check_branch
      %102 = sbr.rel (%p100) target = $region20
    $region19: #{forward.1} parent=5 // pred_region
      // Predicated region
      $region21: #{forward.1} parent=19 // pred_check
        %p103 = pneg %p28
      $region22: #{forward.1} parent=19 // pred_check_branch
        %105 = sbr.rel (%p103) target = $region24
      $region23: #{forward.1} parent=19 // pred_region
        %s106 = smul.u32 3, %s8
        %p107 = scmp.lt.s32.totalorder %s106, 5
        %s108 = scalar_select %p107, %s106, 5
        %s109 = smul.addr %s108, 8
        %s110 = scalar_lea.vmem %s0, %s109
        %s111 = smul.u32 3, %s8
      $region24: #{forward.1} parent=19 // pred_fallthru
        _
    $region20: #{forward.1} parent=5 // pred_fallthru
      _
    %p112 = scmp.le.s32.totalorder 1, %s8
    %p113 = scmp.lt.s32.totalorder %s8, 3
    %p114 = pnand %p112, %p113
    %p115 = pneg %p114
    // Predicated region
    $region25: #{forward.1} parent=5 // pred_check
      _
    $region26: #{forward.1} parent=5 // pred_check_branch
      %117 = sbr.rel (%p114) target = $region28
    $region27: #{forward.1} parent=5 // pred_region
      %s118 = ssub.s32 %s8, 1
      %s119 = smul.u32 3, %s13
      %p120 = scmp.lt.s32.totalorder %s119, 5
      %s121 = scalar_select %p120, %s119, 5
      %s122 = smul.addr %s121, 8
      %s123 = scalar_lea.vmem %s0, %s122
      %p124 = pneg %p34
      %p125 = pneg %p31
      %p126 = pneg %p55
      %p127 = pneg %p52
      %p128 = pneg %p81
      %p129 = pneg %p78
      %s130 = smul.u32 3, %s13
      %p131 = scmp.lt.s32.totalorder %s130, 5
      %s132 = scalar_select %p131, %s130, 5
      %s133 = smul.addr %s132, 8
      %s134 = scalar_lea.vmem %s2, %s133
      %s135 = smul.u32 3, %s13
      %p136 = scmp.lt.s32.totalorder %s135, 5
      %s137 = scalar_select %p136, %s135, 5
      %s138 = smul.addr %s137, 8
      %s139 = scalar_lea.vmem %s0, %s138
      %s140 = smul.u32 3, %s13
      %s141 = smul.u32 3, %s13
      %p142 = scmp.lt.s32.totalorder %s141, 5
      %s143 = scalar_select %p142, %s141, 5
      %s144 = smul.addr %s143, 8
      %s145 = scalar_lea.vmem %s2, %s144
      %s146 = smul.u32 3, %s13
      %v147 = vld [vmem:[%s139] sm:$0xff]
      %v148 = vld [vmem:[%s139 + $0x8] sm:$0xff]
      %v149 = vld [vmem:[%s139 + $0x10] sm:$0xff]
      %v150 = vld [vmem:[%s1] sm:$0xff]
      %v151 = vld [vmem:[%s1 + $0x8] sm:$0xff]
      %v152 = vld [vmem:[%s1 + $0x10] sm:$0xff]
      %v153 = vld [vmem:[%s1 + $0x18] sm:$0xff]
      %v154 = vld [vmem:[%s1 + $0x20] sm:$0xff]
      %v155 = vld [vmem:[%s1 + $0x28] sm:$0xff]
      %v156 = vld [vmem:[%s1 + $0x30] sm:$0xff]
      %v157 = vld [vmem:[%s1 + $0x38] sm:$0xff]
      %v158 = vld [vmem:[%s1 + $0x40] sm:$0xff]
      %v159 = vld [vmem:[%s1 + $0x48] sm:$0xff]
      %v160 = vld [vmem:[%s1 + $0x50] sm:$0xff]
      %v161 = vld [vmem:[%s1 + $0x58] sm:$0xff]
      %v162 = vld [vmem:[%s1 + $0x60] sm:$0xff]
      %v163 = vld [vmem:[%s1 + $0x68] sm:$0xff]
      %v164 = vld [vmem:[%s1 + $0x70] sm:$0xff]
      %v165 = vld [vmem:[%s1 + $0x78] sm:$0xff]
      %166 = vmatprep.subr.mxu0 0.0
      %167 = vmatpush1.msra.mxu0 %v150
      %168 = vmatprep.subr.mxu0 0.0
      %169 = vmatpush1.msra.mxu0 %v151
      %170 = vmatprep.subr.mxu0 0.0
      %171 = vmatpush1.msra.mxu0 %v152
      %172 = vmatprep.subr.mxu0 0.0
      %173 = vmatpush1.msra.mxu0 %v153
      %174 = vmatprep.subr.mxu0 0.0
      %175 = vmatpush1.msra.mxu0 %v154
      %176 = vmatprep.subr.mxu0 0.0
      %177 = vmatpush1.msra.mxu0 %v155
      %178 = vmatprep.subr.mxu0 0.0
      %179 = vmatpush1.msra.mxu0 %v156
      %180 = vmatprep.subr.mxu0 0.0
      %181 = vmatpush1.msra.mxu0 %v157
      %182 = vmatprep.subr.mxu0 0.0
      %183 = vmatpush1.msra.mxu0 %v158
      %184 = vmatprep.subr.mxu0 0.0
      %185 = vmatpush1.msra.mxu0 %v159
      %186 = vmatprep.subr.mxu0 0.0
      %187 = vmatpush1.msra.mxu0 %v160
      %188 = vmatprep.subr.mxu0 0.0
      %189 = vmatpush1.msra.mxu0 %v161
      %190 = vmatprep.subr.mxu0 0.0
      %191 = vmatpush1.msra.mxu0 %v162
      %192 = vmatprep.subr.mxu0 0.0
      %193 = vmatpush1.msra.mxu0 %v163
      %194 = vmatprep.subr.mxu0 0.0
      %195 = vmatpush1.msra.mxu0 %v164
      %196 = vmatprep.subr.mxu0 0.0
      %197 = vmatpush1.msra.mxu0 %v165
      %198 = vmatprep.subr.mxu0 0.0
      %199 = vmatpush1.msra.mxu0 0.0
      %200 = vmatprep.subr.mxu0 0.0
      %201 = vmatpush1.msra.mxu0 0.0
      %202 = vmatprep.subr.mxu0 0.0
      %203 = vmatpush1.msra.mxu0 0.0
      %204 = vmatprep.subr.mxu0 0.0
      %205 = vmatpush1.msra.mxu0 0.0
      %206 = vmatprep.subr.mxu0 0.0
      %207 = vmatpush1.msra.mxu0 0.0
      %208 = vmatprep.subr.mxu0 0.0
      %209 = vmatpush1.msra.mxu0 0.0
      %210 = vmatprep.subr.mxu0 0.0
      %211 = vmatpush1.msra.mxu0 0.0
      %212 = vmatprep.subr.mxu0 0.0
      %213 = vmatpush1.msra.mxu0 0.0
      %214 = vmatprep.subr.mxu0 0.0
      %215 = vmatpush1.msra.mxu0 0.0
      %216 = vmatprep.subr.mxu0 0.0
      %217 = vmatpush1.msra.mxu0 0.0
      %218 = vmatprep.subr.mxu0 0.0
      %219 = vmatpush1.msra.mxu0 0.0
      %220 = vmatprep.subr.mxu0 0.0
      %221 = vmatpush1.msra.mxu0 0.0
      %222 = vmatprep.subr.mxu0 0.0
      %223 = vmatpush1.msra.mxu0 0.0
      %224 = vmatprep.subr.mxu0 0.0
      %225 = vmatpush1.msra.mxu0 0.0
      %226 = vmatprep.subr.mxu0 0.0
      %227 = vmatpush1.msra.mxu0 0.0
      %228 = vmatprep.subr.mxu0 0.0
      %229 = vmatpush1.msra.mxu0 0.0
      %230 = vmatprep.mubr.f32.mxu0 0.0
      %231 = vmatmul.mubr.f32.gmra.mrb[0].mxu0 %v147
      %v232 = vpop.f32.mrb[0].mxu0
      %v233 = vadd.f32 0.0, %v232
      %v234 = vpop.f32.mrb[0].mxu0
      %235 = vmatprep.mubr.f32.mxu0 0.0
      %236 = vmatmul.mubr.f32.gmra.mrb[0].mxu0 %v148
      %v237 = vpop.f32.mrb[0].mxu0
      %v238 = vadd.f32 0.0, %v237
      %v239 = vpop.f32.mrb[0].mxu0
      %240 = vmatprep.mubr.f32.mxu0 0.0
      %241 = vmatmul.mubr.f32.gmra.mrb[0].mxu0 %v149
      %v242 = vpop.f32.mrb[0].mxu0
      %v243 = vadd.f32 0.0, %v242
      %v244 = vpop.f32.mrb[0].mxu0
      %245 = vdwg.mxu0
      %246 = vst [vmem:[%s145] sm:$0xff] %v233
      %247 = vst [vmem:[%s145 + $0x8] sm:$0xff] %v238
      %248 = vst [vmem:[%s145 + $0x10] sm:$0xff] %v243
      %s249 = smul.u32 3, %s13
      %p250 = scmp.lt.s32.totalorder %s249, 5
      %s251 = scalar_select %p250, %s249, 5
      %s252 = smul.addr %s251, 8
      %s253 = scalar_lea.vmem %s2, %s252
      // Predicated region
      $region29: #{forward.1} parent=27 // pred_check
        %p254 = pneg %p78
      $region30: #{forward.1} parent=27 // pred_check_branch
        %256 = sbr.rel (%p254) target = $region32
      $region31: #{forward.1} parent=27 // pred_region
        %s257 = smul.u32 3, %s13
      $region32: #{forward.1} parent=27 // pred_fallthru
        _
    $region28: #{forward.1} parent=5 // pred_fallthru
      _
    %p258 = scmp.le.s32.totalorder 2, %s8
    // Predicated region
    $region33: #{forward.1} parent=5 // pred_check
      %p259 = pneg %p258
    $region34: #{forward.1} parent=5 // pred_check_branch
      %261 = sbr.rel (%p259) target = $region36
    $region35: #{forward.1} parent=5 // pred_region
      %s262 = ssub.s32 %s8, 2
      // Predicated region
      $region37: #{forward.1} parent=35 // pred_check
        %p263 = pneg %p84
      $region38: #{forward.1} parent=35 // pred_check_branch
        %265 = sbr.rel (%p263) target = $region40
      $region39: #{forward.1} parent=35 // pred_region
        %s266 = smul.u32 3, %s14
        %p267 = scmp.lt.s32.totalorder %s266, 5
        %s268 = scalar_select %p267, %s266, 5
        %s269 = smul.addr %s268, 8
        %s270 = scalar_lea.vmem %s2, %s269
      $region40: #{forward.1} parent=35 // pred_fallthru
        _
    $region36: #{forward.1} parent=5 // pred_fallthru
      _
  $region6: #{forward.1} parent=0 // loop_footer
    %s12 = sadd.s32 1, %s8
  $region7: #{forward.1} parent=0 // loop_footer_branch
    %7 = sbr.rel target = $region3
  $region8: #{forward.1} parent=0 // loop_exit
    _

</llo_original>
